<compile_context>
chip_gen: v5e
topology: v5e:2x2
jax: 0.10.0
libtpu: 0.0.40
codegen_flags: <defaults>
</compile_context>

<pallas_src>
import math
from functools import partial

import jax
import jax.numpy as jnp
from jax.experimental import pallas as pl
from jax.experimental.pallas import tpu as pltpu


def _folded_matmul_kernel(x_ref, t_ref, o_ref):
    # One MXU matmul per grid step: (TM, Kp) @ (Kp, Kp) -> (TM, Kp),
    # f32 accumulation, lane-dense (Kp multiple of 128) output store.
    o_ref[...] = jnp.dot(
        x_ref[...], t_ref[...], preferred_element_type=jnp.float32
    ).astype(o_ref.dtype)


def _build_folded_operator(wr, wi, N, L):
    """Fold rfft(:L) -> complex channel mixing -> irfft (and the
    channels-first permutation) into one real (N*ck, N*ck) operator that acts
    directly on the natural (N, ck)-flattened layout of x."""
    ck = wr.shape[0]
    n = jnp.arange(N, dtype=jnp.float32)
    m = jnp.arange(L, dtype=jnp.float32)

    # forward rfft basis: F[n, l] = exp(-2*pi*i*n*l/N)
    ang_f = 2.0 * math.pi * jnp.outer(n, m) / float(N)            # (N, L)
    F = jnp.cos(ang_f) - 1j * jnp.sin(ang_f)

    # inverse real-DFT basis with hermitian-symmetry coefficients
    # (imag parts of DC / Nyquist bins are dropped, matching irfft semantics)
    coef = jnp.full((L,), 2.0, dtype=jnp.float32)
    coef = coef.at[0].set(1.0)
    if (N % 2 == 0) and (L == N // 2 + 1):
        coef = coef.at[L - 1].set(1.0)
    ang_i = 2.0 * math.pi * jnp.outer(m, n) / float(N)             # (L, N)
    G = (coef[:, None] / float(N)) * (jnp.cos(ang_i) + 1j * jnp.sin(ang_i))

    W = (wr + 1j * wi).astype(jnp.complex64)                       # (ck, ck, L)

    # T[(n,i), (n',o)] = Re( sum_l F[n,l] * W[i,o,l] * G[l,n'] )
    T = jnp.einsum('nl,iol,lm->nimo', F, W, G)
    return jnp.real(T).reshape(N * ck, N * ck).astype(jnp.float32)


@partial(jax.jit, static_argnames=("modes1",))
def sparse_kernel_ft1d(x, weights_r, weights_i, modes1):
    """x: (B, N, c, k) float32; weights_{r,i}: (c*k, c*k, modes1)."""
    B, N, c, k = x.shape
    ck = c * k
    L = min(modes1, N // 2 + 1)
    K = N * ck

    # Cheap weight-only precompute (independent of x values), folded operator.
    T = _build_folded_operator(weights_r[:, :, :L], weights_i[:, :, :L], N, L)

    # Pad rows (batch) to a multiple of 8 sublanes and lanes to a multiple of
    # 128 so the matmul maps onto full vregs / a native MXU tile.
    Mp = max(8, ((B + 7) // 8) * 8)
    TM = Mp if Mp <= 128 else 128
    Mp = ((Mp + TM - 1) // TM) * TM
    Kp = ((K + 127) // 128) * 128

    x2d = x.reshape(B, K)                       # no transpose: layout folded into T
    if (Mp, Kp) != (B, K):
        xp = jnp.zeros((Mp, Kp), x2d.dtype).at[:B, :K].set(x2d)
    else:
        xp = x2d
    if Kp != K:
        Tp = jnp.zeros((Kp, Kp), T.dtype).at[:K, :K].set(T)
    else:
        Tp = T

    out2d = pl.pallas_call(
        _folded_matmul_kernel,
        out_shape=jax.ShapeDtypeStruct((Mp, Kp), x.dtype),
        grid=(Mp // TM,),
        in_specs=[
            pl.BlockSpec((TM, Kp), lambda i: (i, 0)),   # x row tile
            pl.BlockSpec((Kp, Kp), lambda i: (0, 0)),   # folded operator (constant)
        ],
        out_specs=pl.BlockSpec((TM, Kp), lambda i: (i, 0)),
        compiler_params=pltpu.CompilerParams(
            dimension_semantics=("parallel",)),
    )(xp, Tp)

    return out2d[:B, :K].reshape(B, N, c, k)


def reference_forward(x, weights_r, weights_i, modes1):
    """Pure-JAX reference matching the PyTorch module exactly."""
    B, N, c, k = x.shape
    ck = c * k
    xv = jnp.transpose(x.reshape(B, N, ck), (0, 2, 1))
    xf = jnp.fft.rfft(xv)
    L = min(modes1, N // 2 + 1)
    w = (weights_r + 1j * weights_i).astype(jnp.complex64)
    y = jnp.einsum('bix,iox->box', xf[:, :, :L], w[:, :, :L])
    out_ft = jnp.zeros((B, ck, N // 2 + 1), dtype=jnp.complex64)
    out_ft = out_ft.at[:, :, :L].set(y)
    xo = jnp.fft.irfft(out_ft, n=N)
    return jnp.transpose(xo, (0, 2, 1)).reshape(B, N, c, k)


if __name__ == "__main__":
    # module config: sparseKernelFT1d(k=4, alpha=6, c=2)
    k_sz, alpha, c_sz = 4, 6, 2
    B, N = 2, 16
    ck = c_sz * k_sz
    scale = 1.0 / (ck * ck)

    key = jax.random.PRNGKey(0)
    kx, kr, ki = jax.random.split(key, 3)

    x = jax.random.normal(kx, (B, N, c_sz, k_sz), dtype=jnp.float32)
    # deterministic init mimicking scale * torch.rand(ck, ck, modes1) (complex)
    weights_r = scale * jax.random.uniform(kr, (ck, ck, alpha), dtype=jnp.float32)
    weights_i = scale * jax.random.uniform(ki, (ck, ck, alpha), dtype=jnp.float32)

    out = sparse_kernel_ft1d(x, weights_r, weights_i, alpha)
    out = jax.block_until_ready(out)

    ref = reference_forward(x, weights_r, weights_i, alpha)
    assert out.shape == (B, N, c_sz, k_sz)
    err = float(jnp.max(jnp.abs(out - ref)))
    assert jnp.allclose(out, ref, atol=3e-4, rtol=3e-4), err

    print("KERNEL_OK")
</pallas_src>

<mosaic_0001>
module attributes {stable_mosaic.version = 11 : i64} {
  func.func @_folded_matmul_kernel(%arg0: i32, %arg1: memref<8x128xf32, #tpu.memory_space<vmem>>, %arg2: memref<128x128xf32, #tpu.memory_space<vmem>>, %arg3: memref<8x128xf32, #tpu.memory_space<vmem>>) attributes {dimension_semantics = [#tpu.dimension_semantics<parallel>], iteration_bounds = array<i64: 1>, scalar_prefetch = 0 : i64, scratch_operands = 0 : i64, tpu.core_type = #tpu.core_type<tc>, window_params = [{transform_indices = @transform_0, window_bounds = array<i64: 8, 128>}, {pipeline_mode = #tpu.pipeline_mode<synchronous>, transform_indices = @transform_1, window_bounds = array<i64: 128, 128>}, {transform_indices = @transform_2, window_bounds = array<i64: 8, 128>}]} {
    %c0 = arith.constant 0 : index
    %c0_0 = arith.constant 0 : index
    %0 = vector.load %arg1[%c0, %c0_0] : memref<8x128xf32, #tpu.memory_space<vmem>>, vector<8x128xf32>
    %c0_1 = arith.constant 0 : index
    %c0_2 = arith.constant 0 : index
    %1 = vector.load %arg2[%c0_1, %c0_2] : memref<128x128xf32, #tpu.memory_space<vmem>>, vector<128x128xf32>
    %cst = arith.constant dense<0.000000e+00> : vector<8x128xf32>
    %2 = tpu.matmul %0, %1, %cst {dimension_numbers = #tpu.dot_dimension_numbers<[1], [0], [0], [1], [0, 0, 1, 1], [], []>} : vector<8x128xf32>, vector<128x128xf32>, vector<8x128xf32> -> vector<8x128xf32>
    %c0_3 = arith.constant 0 : index
    %c0_4 = arith.constant 0 : index
    %3 = vector.load %arg3[%c0_3, %c0_4] : memref<8x128xf32, #tpu.memory_space<vmem>>, vector<8x128xf32>
    tpu.vector_store %arg3[%c0_3, %c0_4], %2 {strides = array<i32>} : memref<8x128xf32, #tpu.memory_space<vmem>>, vector<8x128xf32>,
    return
  }
  func.func @transform_0(%arg0: i32) -> (i32, i32) {
    %c0_i32 = arith.constant 0 : i32
    %c0_i32_0 = arith.constant 0 : i32
    return %arg0, %c0_i32 : i32, i32
  }
  func.func @transform_1(%arg0: i32) -> (i32, i32) {
    %c0_i32 = arith.constant 0 : i32
    %c0_i32_0 = arith.constant 0 : i32
    %c0_i32_1 = arith.constant 0 : i32
    return %c0_i32, %c0_i32_0 : i32, i32
  }
  func.func @transform_2(%arg0: i32) -> (i32, i32) {
    %c0_i32 = arith.constant 0 : i32
    %c0_i32_0 = arith.constant 0 : i32
    return %arg0, %c0_i32 : i32, i32
  }
}

</mosaic_0001>

<llo_original>
// kernel: sparse_kernel_ft1d.1
$region0: #{sparse_kernel_ft1d.1}
  #allocation0 [shape = 'u32[]', space=smem, size = 0x4, offset = 0x4, fixed_abs, tag = 'smem constant byte address 0x4 - core index']
  #allocation1 [shape = 'u32[72,128]{1,0:T(1,128)}', space=vmem, size = 0x9000, scoped, tag = 'internal scratch']
  %s0 = inlined_call_operand.vmem [shape: f32[8,128], index: 0, kind: input, shape index: {}]
  %s1 = inlined_call_operand.vmem [shape: f32[128,128], index: 1, kind: input, shape index: {}]
  %s2 = inlined_call_operand.vmem [shape: f32[8,128], index: 2, kind: output, shape index: {}]
  %s3 = sld [smem:[#allocation0]]
  $region18: #{sparse_kernel_ft1d.1} parent=0
    _
  %s5 = ssub.s32 1, %s3
  %s6 = scalar_select 0, %s5, %s3
  // Predicated region
  $region2: #{sparse_kernel_ft1d.1} parent=0 // pred_check
    _
  $region3: #{sparse_kernel_ft1d.1} parent=0 // pred_check_branch
    %8 = sbr.rel (0) target = $region5
  $region4: #{sparse_kernel_ft1d.1} parent=0 // pred_region
    _
  $region5: #{sparse_kernel_ft1d.1} parent=0 // pred_fallthru
    _
  // Predicated region
  $region6: #{sparse_kernel_ft1d.1} parent=0 // pred_check
    _
  $region7: #{sparse_kernel_ft1d.1} parent=0 // pred_check_branch
    %10 = sbr.rel (0) target = $region9
  $region8: #{sparse_kernel_ft1d.1} parent=0 // pred_region
    _
  $region9: #{sparse_kernel_ft1d.1} parent=0 // pred_fallthru
    _
  %v11 = vld [vmem:[%s0] sm:$0xff]
  %v12 = vld [vmem:[%s1] sm:$0xff]
  %v13 = vld [vmem:[%s1 + $0x8] sm:$0xff]
  %v14 = vld [vmem:[%s1 + $0x10] sm:$0xff]
  %v15 = vld [vmem:[%s1 + $0x18] sm:$0xff]
  %v16 = vld [vmem:[%s1 + $0x20] sm:$0xff]
  %v17 = vld [vmem:[%s1 + $0x28] sm:$0xff]
  %v18 = vld [vmem:[%s1 + $0x30] sm:$0xff]
  %v19 = vld [vmem:[%s1 + $0x38] sm:$0xff]
  %v20 = vld [vmem:[%s1 + $0x40] sm:$0xff]
  %v21 = vld [vmem:[%s1 + $0x48] sm:$0xff]
  %v22 = vld [vmem:[%s1 + $0x50] sm:$0xff]
  %v23 = vld [vmem:[%s1 + $0x58] sm:$0xff]
  %v24 = vld [vmem:[%s1 + $0x60] sm:$0xff]
  %v25 = vld [vmem:[%s1 + $0x68] sm:$0xff]
  %v26 = vld [vmem:[%s1 + $0x70] sm:$0xff]
  %v27 = vld [vmem:[%s1 + $0x78] sm:$0xff]
  %28 = vmatpush.msra.mxu0 %v27
  %29 = vmatpush.msra.mxu0 %v26
  %30 = vmatpush.msra.mxu0 %v25
  %31 = vmatpush.msra.mxu0 %v24
  %32 = vmatpush.msra.mxu0 %v23
  %33 = vmatpush.msra.mxu0 %v22
  %34 = vmatpush.msra.mxu0 %v21
  %35 = vmatpush.msra.mxu0 %v20
  %36 = vmatpush.msra.mxu0 %v19
  %37 = vmatpush.msra.mxu0 %v18
  %38 = vmatpush.msra.mxu0 %v17
  %39 = vmatpush.msra.mxu0 %v16
  %40 = vmatpush.msra.mxu0 %v15
  %41 = vmatpush.msra.mxu0 %v14
  %42 = vmatpush.msra.mxu0 %v13
  %43 = vmatpush.msra.mxu0 %v12
  %44 = vmatmul.f32.gmra.mxu0 %v11
  %v45 = vpop.f32.mrf.mxu0
  %v46 = vadd.f32 0.0, %v45
  %47 = vdwg.mxu0
  %48 = vst [vmem:[%s2] sm:$0xff] %v46
  // Predicated region
  $region10: #{sparse_kernel_ft1d.1} parent=0 // pred_check
    _
  $region11: #{sparse_kernel_ft1d.1} parent=0 // pred_check_branch
    %50 = sbr.rel (0) target = $region13
  $region12: #{sparse_kernel_ft1d.1} parent=0 // pred_region
    _
  $region13: #{sparse_kernel_ft1d.1} parent=0 // pred_fallthru
    _
  // Predicated region
  $region14: #{sparse_kernel_ft1d.1} parent=0 // pred_check
    _
  $region15: #{sparse_kernel_ft1d.1} parent=0 // pred_check_branch
    %52 = sbr.rel (0) target = $region17
  $region16: #{sparse_kernel_ft1d.1} parent=0 // pred_region
    _
  $region17: #{sparse_kernel_ft1d.1} parent=0 // pred_fallthru
    _

</llo_original>
